<compile_context>
chip_gen: v7x
topology: tpu7x:2x2x1
jax: 0.10.0
libtpu: 0.0.40
codegen_flags: <defaults>
</compile_context>

<pallas_src>
import functools

import jax
import jax.numpy as jnp
from jax.experimental import pallas as pl
from jax.experimental.pallas import tpu as pltpu

_BN_EPS = 1e-5


# ---------------------------------------------------------------------------
# Tiling / budget helpers
# ---------------------------------------------------------------------------
def _vmem_limit_bytes():
    """3/4 of physical VMEM, clamped to a sane range (works on v5e/v6e/v7x)."""
    cap = 64 * 1024 * 1024
    try:
        info = pltpu.get_tpu_info()
        cap = int(getattr(info, "vmem_capacity_bytes", cap))
    except Exception:
        pass
    return max(32 * 1024 * 1024, min(cap * 3 // 4, 100 * 1024 * 1024))


def _pick_n_tile(n):
    """Returns (tile_n, n_padded); tile_n is a multiple of 8 or == n_padded."""
    for c in (1024, 512, 256, 128, 64):
        if n % c == 0:
            return c, n
    if n <= 256:
        for c in (128, 64, 32, 16, 8):
            if n % c == 0:
                return c, n
        n_pad = -(-n // 8) * 8
        return n_pad, n_pad                      # single (padded) batch tile
    n_pad = -(-n // 256) * 256                   # guard: never a huge full-dim tile
    return 256, n_pad


def _pick_k_tile(f):
    """Returns (tile_k, f_padded); tile_k is a multiple of 128 or == f_padded."""
    for c in (1024, 512, 256, 128):
        if f % c == 0:
            return c, f
    if f <= 1024:
        return f, f                              # small awkward F: single K step
    f_pad = -(-f // 512) * 512
    return 512, f_pad


def _pick_b_tile(b):
    """tile_b = 128: lane-dense, MXU-width on v5e, and >=2 parallel blocks
    on v7x for typical bottleneck_dim=256."""
    b_pad = -(-b // 128) * 128
    return 128, b_pad


# ---------------------------------------------------------------------------
# Plain Linear: y = x @ W (+ bias).  Grid (B_tiles, N_tiles, K_tiles),
# W resident across batch tiles when it fits.
# ---------------------------------------------------------------------------
def _linear_kernel(x_ref, w_ref, b_ref, o_ref, *scratch,
                   tile_k, w_resident, use_bf16, use_scratch, add_bias):
    k = pl.program_id(2)
    nk = pl.num_programs(2)
    acc = scratch[0] if use_scratch else o_ref

    @pl.when(k == 0)
    def _init():
        acc[...] = jnp.zeros_like(acc)

    if w_resident:
        koff = pl.multiple_of(k * tile_k, tile_k)
        w_blk = w_ref[pl.ds(koff, tile_k), :]
    else:
        w_blk = w_ref[...]
    x_blk = x_ref[...]
    if use_bf16:
        x_blk = x_blk.astype(jnp.bfloat16)       # in-register cast, no HBM pass
    acc[...] += jnp.dot(x_blk, w_blk, preferred_element_type=jnp.float32)

    if use_scratch:
        @pl.when(k == nk - 1)
        def _finalize():
            res = acc[...]
            if add_bias:
                res = res + b_ref[...].astype(jnp.float32)
            o_ref[...] = res.astype(o_ref.dtype)
    elif add_bias:
        @pl.when(k == nk - 1)
        def _finalize():
            o_ref[...] += b_ref[...].astype(o_ref.dtype)


def _linear(x, weight_t, bias2, *, tile_n, tile_b, tile_k, out_dtype,
            w_resident, use_bf16, add_bias, vmem_limit):
    n_pad, f_pad = x.shape
    b_pad = weight_t.shape[1]
    grid = (b_pad // tile_b, n_pad // tile_n, f_pad // tile_k)
    use_scratch = jnp.dtype(out_dtype) != jnp.dtype(jnp.float32)

    if w_resident:
        w_spec = pl.BlockSpec((f_pad, tile_b), lambda j, i, k: (0, j))
    else:
        w_spec = pl.BlockSpec((tile_k, tile_b), lambda j, i, k: (k, j))

    kernel = functools.partial(_linear_kernel, tile_k=tile_k,
                               w_resident=w_resident, use_bf16=use_bf16,
                               use_scratch=use_scratch, add_bias=add_bias)
    scratch = [pltpu.VMEM((tile_n, tile_b), jnp.float32)] if use_scratch else []

    return pl.pallas_call(
        kernel,
        out_shape=jax.ShapeDtypeStruct((n_pad, b_pad), out_dtype),
        grid_spec=pltpu.PrefetchScalarGridSpec(
            num_scalar_prefetch=0,
            grid=grid,
            in_specs=[
                pl.BlockSpec((tile_n, tile_k), lambda j, i, k: (i, k)),   # x
                w_spec,                                                    # W
                pl.BlockSpec((1, tile_b), lambda j, i, k: (0, j)),         # bias
            ],
            out_specs=pl.BlockSpec((tile_n, tile_b), lambda j, i, k: (i, j)),
            scratch_shapes=scratch,
        ),
        compiler_params=pltpu.CompilerParams(
            dimension_semantics=("parallel", "parallel", "arbitrary"),
            vmem_limit_bytes=vmem_limit),
    )(x, weight_t, bias2)


# ---------------------------------------------------------------------------
# Fused Linear + BatchNorm1d (training-mode batch statistics).
# Grid (B_tiles, N_tiles, K_tiles); the whole (N, tile_b) output column stays
# resident in VMEM, stats accumulate per K-finalize, one normalize+write.
# Bias is skipped (exactly cancelled by the mean subtraction).
# ---------------------------------------------------------------------------
def _fused_kernel(x_ref, w_ref, g_ref, bta_ref, o_ref, acc_ref, sum_ref, ssq_ref,
                  *, tile_n, tile_k, n_total, eps, w_resident, use_bf16):
    i = pl.program_id(1)
    k = pl.program_id(2)
    ni = pl.num_programs(1)
    nk = pl.num_programs(2)

    @pl.when(k == 0)
    def _init_acc():
        acc_ref[...] = jnp.zeros_like(acc_ref)

    @pl.when(jnp.logical_and(i == 0, k == 0))
    def _init_stats():
        sum_ref[...] = jnp.zeros_like(sum_ref)
        ssq_ref[...] = jnp.zeros_like(ssq_ref)

    if w_resident:
        koff = pl.multiple_of(k * tile_k, tile_k)
        w_blk = w_ref[pl.ds(koff, tile_k), :]
    else:
        w_blk = w_ref[...]
    x_blk = x_ref[...]
    if use_bf16:
        x_blk = x_blk.astype(jnp.bfloat16)
    acc_ref[...] += jnp.dot(x_blk, w_blk, preferred_element_type=jnp.float32)

    @pl.when(k == nk - 1)
    def _stats_and_stash():
        y = acc_ref[...]                                   # f32 (tile_n, tile_b)
        sum_ref[...] += jnp.sum(y, axis=0, keepdims=True)
        ssq_ref[...] += jnp.sum(y * y, axis=0, keepdims=True)
        roff = pl.multiple_of(i * tile_n, tile_n)
        o_ref[pl.ds(roff, tile_n), :] = y.astype(o_ref.dtype)

    @pl.when(jnp.logical_and(i == ni - 1, k == nk - 1))
    def _normalize():
        inv_n = 1.0 / float(n_total)
        mean = sum_ref[...] * inv_n
        var = jnp.maximum(ssq_ref[...] * inv_n - mean * mean, 0.0)
        scale = g_ref[...].astype(jnp.float32) * jax.lax.rsqrt(var + eps)
        shift = bta_ref[...].astype(jnp.float32) - mean * scale
        y_all = o_ref[...].astype(jnp.float32)
        o_ref[...] = (y_all * scale + shift).astype(o_ref.dtype)


def _fused_linear_bn(x, weight_t, gamma2, beta2, *, tile_n, tile_b, tile_k,
                     n_total, out_dtype, w_resident, use_bf16, vmem_limit):
    n_pad, f_pad = x.shape
    b_pad = weight_t.shape[1]
    grid = (b_pad // tile_b, n_pad // tile_n, f_pad // tile_k)

    if w_resident:
        w_spec = pl.BlockSpec((f_pad, tile_b), lambda j, i, k: (0, j))
    else:
        w_spec = pl.BlockSpec((tile_k, tile_b), lambda j, i, k: (k, j))

    kernel = functools.partial(_fused_kernel, tile_n=tile_n, tile_k=tile_k,
                               n_total=n_total, eps=_BN_EPS,
                               w_resident=w_resident, use_bf16=use_bf16)

    return pl.pallas_call(
        kernel,
        out_shape=jax.ShapeDtypeStruct((n_pad, b_pad), out_dtype),
        grid_spec=pltpu.PrefetchScalarGridSpec(
            num_scalar_prefetch=0,
            grid=grid,
            in_specs=[
                pl.BlockSpec((tile_n, tile_k), lambda j, i, k: (i, k)),   # x
                w_spec,                                                    # W
                pl.BlockSpec((1, tile_b), lambda j, i, k: (0, j)),         # gamma
                pl.BlockSpec((1, tile_b), lambda j, i, k: (0, j)),         # beta
            ],
            # Whole output column resident across the N and K axes; written
            # back to HBM once per column.
            out_specs=pl.BlockSpec((n_pad, tile_b), lambda j, i, k: (0, j)),
            scratch_shapes=[pltpu.VMEM((tile_n, tile_b), jnp.float32),
                            pltpu.VMEM((1, tile_b), jnp.float32),
                            pltpu.VMEM((1, tile_b), jnp.float32)],
        ),
        compiler_params=pltpu.CompilerParams(
            dimension_semantics=("parallel", "arbitrary", "arbitrary"),
            vmem_limit_bytes=vmem_limit),
    )(x, weight_t, gamma2, beta2)


# ---------------------------------------------------------------------------
# Unfused BatchNorm fallback (only used when the resident column would not
# fit VMEM): small stats kernel + elementwise normalize kernel.
# ---------------------------------------------------------------------------
def _bn_stats_kernel(y_ref, sum_ref, ssq_ref):
    n = pl.program_id(1)

    @pl.when(n == 0)
    def _init():
        sum_ref[...] = jnp.zeros_like(sum_ref)
        ssq_ref[...] = jnp.zeros_like(ssq_ref)

    y = y_ref[...].astype(jnp.float32)
    sum_ref[...] += jnp.sum(y, axis=0, keepdims=True)
    ssq_ref[...] += jnp.sum(y * y, axis=0, keepdims=True)


def _bn_apply_kernel(y_ref, scale_ref, shift_ref, o_ref):
    o_ref[...] = (y_ref[...].astype(jnp.float32) * scale_ref[...]
                  + shift_ref[...]).astype(o_ref.dtype)


def _bn_unfused(y, gamma2, beta2, *, n_total, tile_n, tile_b, out_dtype,
                vmem_limit):
    n_pad, b_pad = y.shape
    s, ss = pl.pallas_call(
        _bn_stats_kernel,
        out_shape=(jax.ShapeDtypeStruct((1, b_pad), jnp.float32),
                   jax.ShapeDtypeStruct((1, b_pad), jnp.float32)),
        grid_spec=pltpu.PrefetchScalarGridSpec(
            num_scalar_prefetch=0,
            grid=(b_pad // tile_b, n_pad // tile_n),
            in_specs=[pl.BlockSpec((tile_n, tile_b), lambda j, n: (n, j))],
            out_specs=(pl.BlockSpec((1, tile_b), lambda j, n: (0, j)),
                       pl.BlockSpec((1, tile_b), lambda j, n: (0, j))),
        ),
        compiler_params=pltpu.CompilerParams(
            dimension_semantics=("parallel", "arbitrary"),
            vmem_limit_bytes=vmem_limit),
    )(y)

    inv_n = 1.0 / float(n_total)
    mean = s * inv_n
    var = jnp.maximum(ss * inv_n - mean * mean, 0.0)
    scale2 = gamma2 * jax.lax.rsqrt(var + _BN_EPS)
    shift2 = beta2 - mean * scale2

    return pl.pallas_call(
        _bn_apply_kernel,
        out_shape=jax.ShapeDtypeStruct((n_pad, b_pad), out_dtype),
        grid_spec=pltpu.PrefetchScalarGridSpec(
            num_scalar_prefetch=0,
            grid=(n_pad // tile_n, b_pad // tile_b),
            in_specs=[pl.BlockSpec((tile_n, tile_b), lambda i, j: (i, j)),
                      pl.BlockSpec((1, tile_b), lambda i, j: (0, j)),
                      pl.BlockSpec((1, tile_b), lambda i, j: (0, j))],
            out_specs=pl.BlockSpec((tile_n, tile_b), lambda i, j: (i, j)),
        ),
        compiler_params=pltpu.CompilerParams(
            dimension_semantics=("parallel", "parallel"),
            vmem_limit_bytes=vmem_limit),
    )(y, scale2, shift2)


# ---------------------------------------------------------------------------
# Public forward
# ---------------------------------------------------------------------------
def feat_bottleneck_forward(x, weight_t, bias, gamma, beta, *,
                            bn_type: str = 'ori',
                            use_bf16: bool = False,
                            _force_unfused: bool = False,
                            _force_w_tiled: bool = False):
    """x: (N, F); weight_t: (F, B); bias/gamma/beta: (B,).

    bn_type='ori' -> Linear only; bn_type='bn' -> Linear + BatchNorm1d
    (training-mode batch statistics, biased variance, eps=1e-5).
    """
    n, f = x.shape
    b = weight_t.shape[1]
    out_dtype = x.dtype

    tile_n, n_pad = _pick_n_tile(n)
    tile_k, f_pad = _pick_k_tile(f)
    tile_b, b_pad = _pick_b_tile(b)

    # Zero-pad to tile multiples (padded x rows / W columns are zero, so the
    # BN statistics computed with n_total = real N stay exact).
    if (n_pad, f_pad) != (n, f):
        x = jnp.pad(x, ((0, n_pad - n), (0, f_pad - f)))
    if (f_pad, b_pad) != (f, b):
        weight_t = jnp.pad(weight_t, ((0, f_pad - f), (0, b_pad - b)))
    pad_b = b_pad - b
    bias2 = bias.astype(jnp.float32).reshape(1, b)
    gamma2 = gamma.astype(jnp.float32).reshape(1, b)
    beta2 = beta.astype(jnp.float32).reshape(1, b)
    if pad_b:
        bias2 = jnp.pad(bias2, ((0, 0), (0, pad_b)))
        gamma2 = jnp.pad(gamma2, ((0, 0), (0, pad_b)), constant_values=1.0)
        beta2 = jnp.pad(beta2, ((0, 0), (0, pad_b)))

    if use_bf16:
        weight_t = weight_t.astype(jnp.bfloat16)  # pre-cast only W (re-read stream)

    vmem_limit = _vmem_limit_bytes()
    xb = jnp.dtype(x.dtype).itemsize
    wb = jnp.dtype(weight_t.dtype).itemsize
    ob = jnp.dtype(out_dtype).itemsize

    w_resident_bytes = 2 * f_pad * tile_b * wb
    w_resident = (not _force_w_tiled) and (w_resident_bytes <= vmem_limit // 4)
    w_stream_bytes = w_resident_bytes if w_resident else 2 * tile_k * tile_b * wb

    if bn_type != 'bn':
        y = _linear(x, weight_t, bias2,
                    tile_n=tile_n, tile_b=tile_b, tile_k=tile_k,
                    out_dtype=out_dtype, w_resident=w_resident,
                    use_bf16=use_bf16, add_bias=True, vmem_limit=vmem_limit)
        return y[:n, :b]

    # --- bn path --------------------------------------------------------
    fused_bytes = (2 * tile_n * tile_k * xb        # x (double buffered)
                   + w_stream_bytes                # weight
                   + 2 * n_pad * tile_b * ob       # resident output column
                   + tile_n * tile_b * 4           # acc scratch
                   + 2 * 8 * tile_b * 4)           # sum / ssq scratch
    use_fused = (not _force_unfused) and fused_bytes <= int(vmem_limit * 0.8)

    if use_fused:
        y = _fused_linear_bn(x, weight_t, gamma2, beta2,
                             tile_n=tile_n, tile_b=tile_b, tile_k=tile_k,
                             n_total=n, out_dtype=out_dtype,
                             w_resident=w_resident, use_bf16=use_bf16,
                             vmem_limit=vmem_limit)
        return y[:n, :b]

    # Fallback: unfused.  Bias is skipped (exactly cancelled by BN mean
    # subtraction) so padded rows stay zero and stats remain exact.
    y_dtype = jnp.bfloat16 if use_bf16 else out_dtype
    y = _linear(x, weight_t, bias2,
                tile_n=tile_n, tile_b=tile_b, tile_k=tile_k,
                out_dtype=y_dtype, w_resident=w_resident,
                use_bf16=use_bf16, add_bias=False, vmem_limit=vmem_limit)
    out = _bn_unfused(y, gamma2, beta2, n_total=n,
                      tile_n=tile_n, tile_b=tile_b, out_dtype=out_dtype,
                      vmem_limit=vmem_limit)
    return out[:n, :b]


def init_params(key, feature_dim, bottleneck_dim):
    """Mirrors the PyTorch module's init_weights:
       Linear: xavier_normal weight, zero bias.
       BatchNorm1d: weight ~ N(1.0, 0.02), bias = 0."""
    k_w, k_g = jax.random.split(key, 2)
    std = (2.0 / (feature_dim + bottleneck_dim)) ** 0.5
    # PyTorch Linear weight is (out, in); store transposed (in, out).
    weight_t = std * jax.random.normal(k_w, (feature_dim, bottleneck_dim),
                                       dtype=jnp.float32)
    bias = jnp.zeros((bottleneck_dim,), dtype=jnp.float32)
    gamma = 1.0 + 0.02 * jax.random.normal(k_g, (bottleneck_dim,),
                                           dtype=jnp.float32)
    beta = jnp.zeros((bottleneck_dim,), dtype=jnp.float32)
    return weight_t, bias, gamma, beta


def _bn_ref(y, gamma, beta):
    mu = y.mean(axis=0, keepdims=True)
    var = ((y - mu) ** 2).mean(axis=0, keepdims=True)
    return (y - mu) / jnp.sqrt(var + _BN_EPS) * gamma + beta


if __name__ == "__main__":
    feature_dim = 32
    bottleneck_dim = 256
    batch = 8

    key = jax.random.PRNGKey(0)
    k_x, k_p = jax.random.split(key)
    x = jax.random.normal(k_x, (batch, feature_dim), dtype=jnp.float32)
    weight_t, bias, gamma, beta = init_params(k_p, feature_dim, bottleneck_dim)

    # type='ori' (default in the PyTorch module): Linear only.
    out_ori = feat_bottleneck_forward(x, weight_t, bias, gamma, beta,
                                      bn_type='ori')
    # type='bn': fused Linear + BatchNorm1d (batch statistics).
    out_bn = feat_bottleneck_forward(x, weight_t, bias, gamma, beta,
                                     bn_type='bn')
    # Unfused fallback path (exercised explicitly for coverage).
    out_bn_unf = feat_bottleneck_forward(x, weight_t, bias, gamma, beta,
                                         bn_type='bn', _force_unfused=True)
    # Tiled-weight variant (exercised explicitly for coverage).
    out_ori_wt = feat_bottleneck_forward(x, weight_t, bias, gamma, beta,
                                         bn_type='ori', _force_w_tiled=True)
    # bf16-weight / in-register x cast variant (bandwidth-optimized).
    out_bn_bf16 = feat_bottleneck_forward(x, weight_t, bias, gamma, beta,
                                          bn_type='bn', use_bf16=True)
    # Odd batch size -> exercises the padding path.
    x_odd = jax.random.normal(k_x, (10, feature_dim), dtype=jnp.float32)
    out_bn_odd = feat_bottleneck_forward(x_odd, weight_t, bias, gamma, beta,
                                         bn_type='bn')

    jax.block_until_ready((out_ori, out_bn, out_bn_unf, out_ori_wt,
                           out_bn_bf16, out_bn_odd))

    # Correctness vs plain JAX references.
    ref_ori = x @ weight_t + bias
    ref_bn = _bn_ref(ref_ori, gamma, beta)
    ref_bn_odd = _bn_ref(x_odd @ weight_t + bias, gamma, beta)

    assert jnp.allclose(out_ori, ref_ori, atol=1e-4, rtol=1e-4)
    assert jnp.allclose(out_ori_wt, ref_ori, atol=1e-4, rtol=1e-4)
    assert jnp.allclose(out_bn, ref_bn, atol=1e-3, rtol=1e-3)
    assert jnp.allclose(out_bn_unf, ref_bn, atol=1e-3, rtol=1e-3)
    assert jnp.allclose(out_bn_odd, ref_bn_odd, atol=1e-3, rtol=1e-3)
    assert jnp.allclose(out_bn_bf16, ref_bn, atol=5e-2, rtol=5e-2)

    print("KERNEL_OK")
</pallas_src>

<mosaic_0001>
module attributes {stable_mosaic.version = 11 : i64} {
  func.func @_linear_kernel(%arg0: i32, %arg1: i32, %arg2: i32, %arg3: memref<8x32xf32, #tpu.memory_space<vmem>>, %arg4: memref<32x128xf32, #tpu.memory_space<vmem>>, %arg5: memref<1x128xf32, #tpu.memory_space<vmem>>, %arg6: memref<8x128xf32, #tpu.memory_space<vmem>>) attributes {dimension_semantics = [#tpu.dimension_semantics<parallel>, #tpu.dimension_semantics<parallel>, #tpu.dimension_semantics<arbitrary>], iteration_bounds = array<i64: 2, 1, 1>, scalar_prefetch = 0 : i64, scratch_operands = 0 : i64, tpu.core_type = #tpu.core_type<tc>, window_params = [{transform_indices = @transform_0, window_bounds = array<i64: 8, 32>}, {transform_indices = @transform_1, window_bounds = array<i64: 32, 128>}, {transform_indices = @transform_2, window_bounds = array<i64: 1, 128>}, {transform_indices = @transform_3, window_bounds = array<i64: 8, 128>}]} {
    %c0_i32 = arith.constant 0 : i32
    %0 = arith.cmpi eq, %arg2, %c0_i32 : i32
    %1 = arith.extui %0 : i1 to i32
    %c0_i32_0 = arith.constant 0 : i32
    %2 = arith.cmpi ne, %1, %c0_i32_0 : i32
    scf.if %2 {
      %cst_9 = arith.constant 0.000000e+00 : f32
      %15 = vector.broadcast %cst_9 : f32 to vector<8x128xf32>
      %c0_10 = arith.constant 0 : index
      %c0_11 = arith.constant 0 : index
      %16 = vector.load %arg6[%c0_10, %c0_11] : memref<8x128xf32, #tpu.memory_space<vmem>>, vector<8x128xf32>
      tpu.vector_store %arg6[%c0_10, %c0_11], %15 {strides = array<i32>} : memref<8x128xf32, #tpu.memory_space<vmem>>, vector<8x128xf32>,
    } else {
    }
    %c32_i32 = arith.constant 32 : i32
    %3 = arith.muli %arg2, %c32_i32 : i32
    %4 = tpu.assume_multiple %3, 32 : i32
    %5 = arith.index_cast %4 : i32 to index
    %c0 = arith.constant 0 : index
    %6 = vector.load %arg4[%5, %c0] : memref<32x128xf32, #tpu.memory_space<vmem>>, vector<32x128xf32>
    %c0_1 = arith.constant 0 : index
    %c0_2 = arith.constant 0 : index
    %7 = vector.load %arg3[%c0_1, %c0_2] : memref<8x32xf32, #tpu.memory_space<vmem>>, vector<8x32xf32>
    %c0_3 = arith.constant 0 : index
    %c0_4 = arith.constant 0 : index
    %8 = vector.load %arg6[%c0_3, %c0_4] : memref<8x128xf32, #tpu.memory_space<vmem>>, vector<8x128xf32>
    %cst = arith.constant dense<0.000000e+00> : vector<8x128xf32>
    %9 = tpu.matmul %7, %6, %cst {dimension_numbers = #tpu.dot_dimension_numbers<[1], [0], [0], [1], [0, 0, 1, 1], [], []>} : vector<8x32xf32>, vector<32x128xf32>, vector<8x128xf32> -> vector<8x128xf32>
    %10 = arith.addf %8, %9 : vector<8x128xf32>
    %c0_5 = arith.constant 0 : index
    %c0_6 = arith.constant 0 : index
    %11 = vector.load %arg6[%c0_5, %c0_6] : memref<8x128xf32, #tpu.memory_space<vmem>>, vector<8x128xf32>
    tpu.vector_store %arg6[%c0_5, %c0_6], %10 {strides = array<i32>} : memref<8x128xf32, #tpu.memory_space<vmem>>, vector<8x128xf32>,
    %c0_i32_7 = arith.constant 0 : i32
    %12 = arith.cmpi eq, %arg2, %c0_i32_7 : i32
    %13 = arith.extui %12 : i1 to i32
    %c0_i32_8 = arith.constant 0 : i32
    %14 = arith.cmpi ne, %13, %c0_i32_8 : i32
    scf.if %14 {
      %c0_9 = arith.constant 0 : index
      %c0_10 = arith.constant 0 : index
      %15 = vector.load %arg6[%c0_9, %c0_10] : memref<8x128xf32, #tpu.memory_space<vmem>>, vector<8x128xf32>
      %c0_11 = arith.constant 0 : index
      %c0_12 = arith.constant 0 : index
      %16 = vector.load %arg5[%c0_11, %c0_12] : memref<1x128xf32, #tpu.memory_space<vmem>>, vector<1x128xf32>
      %17 = vector.broadcast %16 : vector<1x128xf32> to vector<8x128xf32>
      %18 = arith.addf %15, %17 : vector<8x128xf32>
      %c0_13 = arith.constant 0 : index
      %c0_14 = arith.constant 0 : index
      %19 = vector.load %arg6[%c0_13, %c0_14] : memref<8x128xf32, #tpu.memory_space<vmem>>, vector<8x128xf32>
      tpu.vector_store %arg6[%c0_13, %c0_14], %18 {strides = array<i32>} : memref<8x128xf32, #tpu.memory_space<vmem>>, vector<8x128xf32>,
    } else {
    }
    return
  }
  func.func @transform_0(%arg0: i32, %arg1: i32, %arg2: i32) -> (i32, i32) {
    %c0_i32 = arith.constant 0 : i32
    return %arg1, %arg2 : i32, i32
  }
  func.func @transform_1(%arg0: i32, %arg1: i32, %arg2: i32) -> (i32, i32) {
    %c0_i32 = arith.constant 0 : i32
    %c0_i32_0 = arith.constant 0 : i32
    return %c0_i32, %arg0 : i32, i32
  }
  func.func @transform_2(%arg0: i32, %arg1: i32, %arg2: i32) -> (i32, i32) {
    %c0_i32 = arith.constant 0 : i32
    %c0_i32_0 = arith.constant 0 : i32
    return %c0_i32, %arg0 : i32, i32
  }
  func.func @transform_3(%arg0: i32, %arg1: i32, %arg2: i32) -> (i32, i32) {
    %c0_i32 = arith.constant 0 : i32
    return %arg1, %arg0 : i32, i32
  }
}

</mosaic_0001>

<llo_original>
// kernel: tpu_custom_call.1
$region0: #{tpu_custom_call.1}
  #allocation0 [shape = 'u32[]', space=smem, size = 0x4, offset = 0x4, fixed_abs, tag = 'smem constant byte address 0x4 - core index']
  #allocation1 [shape = 'u32[144,128]{1,0:T(1,128)}', space=vmem, size = 0x12000, scoped, tag = 'internal scratch']
  %s0 = inlined_call_operand.hbm [shape: f32[8,32], index: 0, kind: input, shape index: {}]
  %s1 = inlined_call_operand.hbm [shape: f32[32,256], index: 1, kind: input, shape index: {}]
  %s2 = inlined_call_operand.vmem [shape: f32[1,256], index: 2, kind: input, shape index: {}]
  %s3 = inlined_call_operand.hbm [shape: f32[8,256], index: 3, kind: output, shape index: {}]
  %s4 = sld [smem:[#allocation0]]
  $region61: #{tpu_custom_call.1} parent=0
    _
  %s6 = ssub.s32 1, %s4
  %s7 = scalar_select 0, %s6, %s4
  $region1: #{tpu_custom_call.1} parent=0
    #allocation2 [shape = 'u8[4096]{0}', space=vmem, size = 0x1000, scoped, tag = 'input window, operand 0, single buffered']
    #allocation3 [shape = 's32[2]{0}', space=sflag, size = 0x8, scoped, tag = 'scoped memory for tpu_custom_call.1']
    #allocation4 [shape = 's32[2]{0}', space=sflag, size = 0x8, scoped, tag = 'scoped memory for tpu_custom_call.1']
    #allocation5 [shape = 'u8[32768]{0}', space=vmem, size = 0x8000, scoped, tag = 'input window, operand 1']
    #allocation6 [shape = 's32[2]{0}', space=sflag, size = 0x8, scoped, tag = 'scoped memory for tpu_custom_call.1']
    #allocation7 [shape = 'u8[8192]{0}', space=vmem, size = 0x2000, scoped, tag = 'output window, operand 0']
    %8 = vsyncpa [#allocation3], 0
    %9 = vsyncpa [#allocation6], 0
    %s10 = scalar_lea.sflag [#allocation6], 1
    %11 = vsyncpa %s10, 0
    %12 = vsyncpa [#allocation4], 0
    %s13 = scalar_lea.sflag [#allocation4], 1
    %14 = vsyncpa %s13, 0
    loop: start=0, step=1, limit=4
    $region2: #{tpu_custom_call.1} parent=1 // loop_pre_header
      _
    $region3: #{tpu_custom_call.1} parent=1 // loop_header
      %s16 = sphi 0, %s20
      %p17 = scmp.ge.s32.totalorder %s16, 4
      %s23 = sphi 0, %s42
      %s24 = sphi 0, %s38
      %s25 = sphi 0, %s34
      %s26 = sphi 0, %s23
      %s27 = sphi 0, %s24
      %s28 = sphi 0, %s25
      %s29 = sphi 0, %s26
      %s30 = sphi 0, %s27
      %s31 = sphi 0, %s28
      %s47 = sphi 0, %s49
      %s50 = sphi 0, %s47
      %s51 = sphi 0, %s50
      %s67 = sphi 0, %s51
      %s73 = sphi 0, %s75
      %s76 = sphi 0, %s73
      %s77 = sphi 0, %s76
      %s93 = sphi 0, %s77
      %s99 = sphi 0, %s101
      %s102 = sphi 0, %s99
      %s103 = sphi 0, %s102
      %s119 = sphi 0, %s103
      %s127 = sphi 0, %s129
      %s130 = sphi 0, %s127
      %s131 = sphi 0, %s130
      %s147 = sphi 0, %s131
    $region4: #{tpu_custom_call.1} parent=1 // loop_header_branch
      %19 = sbr.rel (%p17) target = $region8
    $region5: #{tpu_custom_call.1} parent=1 // loop_body
      %s21 = ssub.s32 %s16, 1
      %s22 = ssub.s32 %s16, 2
      %s32 = sadd.s32 1, %s25
      %p33 = scmp.ge.s32.totalorder %s32, 1
      %s34 = scalar_select %p33, 0, %s32
      %s35 = sadd.s32 1, %s24
      %s36 = scalar_select %p33, %s35, %s24
      %p37 = scmp.ge.s32.totalorder %s36, 1
      %s38 = scalar_select %p37, 0, %s36
      %s39 = sadd.s32 1, %s23
      %s40 = scalar_select %p37, %s39, %s23
      %p41 = scmp.ge.s32.totalorder %s40, 2
      %s42 = scalar_select %p41, 0, %s40
      %s43 = ssub.s32 %s24, %s38
      %s44 = ssub.s32 %s25, %s34
      %s45 = sor.u32 %s43, %s44
      %p46 = scmp.eq.s32.totalorder %s45, 0
      %s48 = sadd.s32 %s47, 1
      %s49 = scalar_select %p46, %s47, %s48
      %p52 = pneg %p46
      %p53 = scmp.eq.s32.totalorder %s16, 1
      %p54 = por %p52, %p53
      %p55 = scmp.ne.s32.totalorder %s47, %s50
      %p56 = scmp.eq.s32.totalorder %s16, 0
      %p57 = por %p55, %p56
      %p58 = scmp.ne.s32.totalorder %s47, %s50
      %p59 = scmp.eq.s32.totalorder %s21, 1
      %p60 = por %p58, %p59
      %p61 = scmp.ne.s32.totalorder %s50, %s51
      %p62 = scmp.eq.s32.totalorder %s21, 0
      %p63 = por %p61, %p62
      %p64 = scmp.ne.s32.totalorder %s50, %s51
      %p65 = scmp.eq.s32.totalorder %s22, 1
      %p66 = por %p64, %p65
      %p68 = scmp.ne.s32.totalorder %s51, %s67
      %p69 = scmp.eq.s32.totalorder %s22, 0
      %p70 = por %p68, %p69
      %s71 = ssub.s32 %s23, %s42
      %p72 = scmp.eq.s32.totalorder %s71, 0
      %s74 = sadd.s32 %s73, 1
      %s75 = scalar_select %p72, %s73, %s74
      %p78 = pneg %p72
      %p79 = scmp.eq.s32.totalorder %s16, 1
      %p80 = por %p78, %p79
      %p81 = scmp.ne.s32.totalorder %s73, %s76
      %p82 = scmp.eq.s32.totalorder %s16, 0
      %p83 = por %p81, %p82
      %p84 = scmp.ne.s32.totalorder %s73, %s76
      %p85 = scmp.eq.s32.totalorder %s21, 1
      %p86 = por %p84, %p85
      %p87 = scmp.ne.s32.totalorder %s76, %s77
      %p88 = scmp.eq.s32.totalorder %s21, 0
      %p89 = por %p87, %p88
      %p90 = scmp.ne.s32.totalorder %s76, %s77
      %p91 = scmp.eq.s32.totalorder %s22, 1
      %p92 = por %p90, %p91
      %p94 = scmp.ne.s32.totalorder %s77, %s93
      %p95 = scmp.eq.s32.totalorder %s22, 0
      %p96 = por %p94, %p95
      %s97 = ssub.s32 %s23, %s42
      %p98 = scmp.eq.s32.totalorder %s97, 0
      %s100 = sadd.s32 %s99, 1
      %s101 = scalar_select %p98, %s99, %s100
      %p104 = pneg %p98
      %p105 = scmp.eq.s32.totalorder %s16, 1
      %p106 = por %p104, %p105
      %p107 = scmp.ne.s32.totalorder %s99, %s102
      %p108 = scmp.eq.s32.totalorder %s16, 0
      %p109 = por %p107, %p108
      %p110 = scmp.ne.s32.totalorder %s99, %s102
      %p111 = scmp.eq.s32.totalorder %s21, 1
      %p112 = por %p110, %p111
      %p113 = scmp.ne.s32.totalorder %s102, %s103
      %p114 = scmp.eq.s32.totalorder %s21, 0
      %p115 = por %p113, %p114
      %p116 = scmp.ne.s32.totalorder %s102, %s103
      %p117 = scmp.eq.s32.totalorder %s22, 1
      %p118 = por %p116, %p117
      %p120 = scmp.ne.s32.totalorder %s103, %s119
      %p121 = scmp.eq.s32.totalorder %s22, 0
      %p122 = por %p120, %p121
      %s123 = ssub.s32 %s24, %s38
      %s124 = ssub.s32 %s23, %s42
      %s125 = sor.u32 %s123, %s124
      %p126 = scmp.eq.s32.totalorder %s125, 0
      %s128 = sadd.s32 %s127, 1
      %s129 = scalar_select %p126, %s127, %s128
      %p132 = pneg %p126
      %p133 = scmp.eq.s32.totalorder %s16, 1
      %p134 = por %p132, %p133
      %p135 = scmp.ne.s32.totalorder %s127, %s130
      %p136 = scmp.eq.s32.totalorder %s16, 0
      %p137 = por %p135, %p136
      %p138 = scmp.ne.s32.totalorder %s127, %s130
      %p139 = scmp.eq.s32.totalorder %s21, 1
      %p140 = por %p138, %p139
      %p141 = scmp.ne.s32.totalorder %s130, %s131
      %p142 = scmp.eq.s32.totalorder %s21, 0
      %p143 = por %p141, %p142
      %p144 = scmp.ne.s32.totalorder %s130, %s131
      %p145 = scmp.eq.s32.totalorder %s22, 1
      %p146 = por %p144, %p145
      %p148 = scmp.ne.s32.totalorder %s131, %s147
      %p149 = scmp.eq.s32.totalorder %s22, 0
      %p150 = por %p148, %p149
      %p151 = scmp.le.s32.totalorder 1, %s16
      %p152 = scmp.lt.s32.totalorder %s16, 3
      %p153 = pnand %p151, %p152
      %p154 = pneg %p153
      // Predicated region
      $region9: #{tpu_custom_call.1} parent=5 // pred_check
        _
      $region10: #{tpu_custom_call.1} parent=5 // pred_check_branch
        %156 = sbr.rel (%p153) target = $region12
      $region11: #{tpu_custom_call.1} parent=5 // pred_region
        %s157 = ssub.s32 %s16, 1
        // Predicated region
        $region13: #{tpu_custom_call.1} parent=11 // pred_check
          %p158 = pneg %p63
        $region14: #{tpu_custom_call.1} parent=11 // pred_check_branch
          %160 = sbr.rel (%p158) target = $region16
        $region15: #{tpu_custom_call.1} parent=11 // pred_region
          %s162 = ssub.s32 128, 128
          %163 = vsyncadd [#allocation3], %s162
          %s164 = sadd.s32 %s28, %s27
          %s165 = smul.addr %s164, 128
          %s166 = scalar_lea.hbm %s0, %s165
          %s168 = sshll.u32 [#allocation2], 4
          %s169 = int_to_ptr.vmem [resolvable:$true] %s168
          %171 = dma.hbm_to_vmem [thread:$0]  %s166, 128, %s169, [#allocation3]
        $region16: #{tpu_custom_call.1} parent=11 // pred_fallthru
          _
      $region12: #{tpu_custom_call.1} parent=5 // pred_fallthru
        _
      %p172 = scmp.lt.s32.totalorder %s16, 2
      // Predicated region
      $region17: #{tpu_custom_call.1} parent=5 // pred_check
        %p173 = pneg %p172
      $region18: #{tpu_custom_call.1} parent=5 // pred_check_branch
        %175 = sbr.rel (%p173) target = $region20
      $region19: #{tpu_custom_call.1} parent=5 // pred_region
        // Predicated region
        $region21: #{tpu_custom_call.1} parent=19 // pred_check
          %p176 = pneg %p83
        $region22: #{tpu_custom_call.1} parent=19 // pred_check_branch
          %178 = sbr.rel (%p176) target = $region24
        $region23: #{tpu_custom_call.1} parent=19 // pred_region
          %s179 = sand.u32 %s73, 1
          %s180 = scalar_lea.sflag [#allocation6], %s179
          %s181 = sand.u32 %s73, 1
          %s182 = smul.addr %s181, 32
          %s183 = scalar_lea.vmem [#allocation5], %s182
          %s185 = ssub.s32 512, 512
          %186 = vsyncadd %s180, %s185
          %s187 = smul.addr %s23, 128
          %s188 = scalar_lea.hbm %s1, %s187
          %s189 = sshll.u32 %s183, 4
          %s190 = int_to_ptr.vmem [resolvable:$true] %s189
          %195 = dma.hbm_to_vmem [thread:$0]  %s188, 512, %s190, %s180, 256, 128, 8
        $region24: #{tpu_custom_call.1} parent=19 // pred_fallthru
          _
        // Predicated region
        $region25: #{tpu_custom_call.1} parent=19 // pred_check
          %p196 = pneg %p109
        $region26: #{tpu_custom_call.1} parent=19 // pred_check_branch
          %198 = sbr.rel (%p196) target = $region28
        $region27: #{tpu_custom_call.1} parent=19 // pred_region
          %p199 = scmp.lt.s32.totalorder %s23, 1
          %s200 = scalar_select %p199, %s23, 1
          %s201 = scalar_lea.vmem %s2, %s200
        $region28: #{tpu_custom_call.1} parent=19 // pred_fallthru
          _
      $region20: #{tpu_custom_call.1} parent=5 // pred_fallthru
        _
      %p202 = scmp.le.s32.totalorder 1, %s16
      %p203 = scmp.lt.s32.totalorder %s16, 3
      %p204 = pnand %p202, %p203
      %p205 = pneg %p204
      // Predicated region
      $region29: #{tpu_custom_call.1} parent=5 // pred_check
        _
      $region30: #{tpu_custom_call.1} parent=5 // pred_check_branch
        %207 = sbr.rel (%p204) target = $region32
      $region31: #{tpu_custom_call.1} parent=5 // pred_region
        %s208 = ssub.s32 %s16, 1
        // Predicated region
        $region33: #{tpu_custom_call.1} parent=31 // pred_check
          %p209 = pneg %p63
        $region34: #{tpu_custom_call.1} parent=31 // pred_check_branch
          %211 = sbr.rel (%p209) target = $region36
        $region35: #{tpu_custom_call.1} parent=31 // pred_region
          %212 = dma.done [#allocation3], 128
        $region36: #{tpu_custom_call.1} parent=31 // pred_fallthru
          _
        %s213 = sand.u32 %s76, 1
        %s214 = scalar_lea.sflag [#allocation6], %s213
        %s215 = sand.u32 %s76, 1
        %s216 = smul.addr %s215, 32
        %s217 = scalar_lea.vmem [#allocation5], %s216
        // Predicated region
        $region37: #{tpu_custom_call.1} parent=31 // pred_check
          %p218 = pneg %p89
        $region38: #{tpu_custom_call.1} parent=31 // pred_check_branch
          %220 = sbr.rel (%p218) target = $region40
        $region39: #{tpu_custom_call.1} parent=31 // pred_region
          %221 = dma.done %s214, 512
        $region40: #{tpu_custom_call.1} parent=31 // pred_fallthru
          _
        %p222 = pneg %p63
        %p223 = pneg %p60
        %s224 = sand.u32 %s76, 1
        %s225 = scalar_lea.sflag [#allocation6], %s224
        %s226 = sand.u32 %s76, 1
        %s227 = smul.addr %s226, 32
        %s228 = scalar_lea.vmem [#allocation5], %s227
        %p229 = pneg %p89
        %p230 = pneg %p86
        %p231 = scmp.lt.s32.totalorder %s26, 1
        %s232 = scalar_select %p231, %s26, 1
        %s233 = scalar_lea.vmem %s2, %s232
        %p234 = pneg %p115
        %p235 = pneg %p112
        %p236 = pneg %p143
        %p237 = pneg %p140
        %s238 = sand.u32 %s130, 1
        %s239 = scalar_lea.sflag [#allocation4], %s238
        %s240 = sand.u32 %s130, 1
        %s241 = smul.addr %s240, 8
        %s242 = scalar_lea.vmem [#allocation7], %s241
        %p243 = scmp.lt.s32.totalorder %s26, 1
        %s244 = scalar_select %p243, %s26, 1
        %s245 = scalar_lea.vmem %s2, %s244
        %p246 = scmp.eq.s32.totalorder %s28, 0
        // Predicated region
        $region41: #{tpu_custom_call.1} parent=31 // pred_check
          %p247 = pneg %p246
        $region42: #{tpu_custom_call.1} parent=31 // pred_check_branch
          %249 = sbr.rel (%p247) target = $region44
        $region43: #{tpu_custom_call.1} parent=31 // pred_region
          %250 = vst [vmem:[%s242] sm:$0xff] 0.0
        $region44: #{tpu_custom_call.1} parent=31 // pred_fallthru
          _
        %s251 = smul.u32 %s28, 32
        %s252 = scalar_lea.vmem %s217, %s251 [#allocation5]
        %v253 = vld [vmem:[%s252] sm:$0xff]
        %v254 = vld [vmem:[%s252 + $0x8] sm:$0xff]
        %v255 = vld [vmem:[%s252 + $0x10] sm:$0xff]
        %v256 = vld [vmem:[%s252 + $0x18] sm:$0xff]
        %v257 = vld [vmem:[#allocation2] sm:$0xff]
        %v258 = vld [vmem:[%s242] sm:$0xff]
        %vm259 = vcmask 261120
        %v261 = vsel %vm259, %v257, 0
        %263 = vmatprep.subr.mxu0 0.0
        %264 = vmatpush1.msra.mxu0 %v253
        %265 = vmatprep.subr.mxu0 0.0
        %266 = vmatpush1.msra.mxu0 %v254
        %267 = vmatprep.subr.mxu0 0.0
        %268 = vmatpush1.msra.mxu0 %v255
        %269 = vmatprep.subr.mxu0 0.0
        %270 = vmatpush1.msra.mxu0 %v256
        %271 = vmatprep.subr.mxu0 0.0
        %272 = vmatpush1.msra.mxu0 0.0
        %273 = vmatprep.subr.mxu0 0.0
        %274 = vmatpush1.msra.mxu0 0.0
        %275 = vmatprep.subr.mxu0 0.0
        %276 = vmatpush1.msra.mxu0 0.0
        %277 = vmatprep.subr.mxu0 0.0
        %278 = vmatpush1.msra.mxu0 0.0
        %279 = vmatprep.subr.mxu0 0.0
        %280 = vmatpush1.msra.mxu0 0.0
        %281 = vmatprep.subr.mxu0 0.0
        %282 = vmatpush1.msra.mxu0 0.0
        %283 = vmatprep.subr.mxu0 0.0
        %284 = vmatpush1.msra.mxu0 0.0
        %285 = vmatprep.subr.mxu0 0.0
        %286 = vmatpush1.msra.mxu0 0.0
        %287 = vmatprep.subr.mxu0 0.0
        %288 = vmatpush1.msra.mxu0 0.0
        %289 = vmatprep.subr.mxu0 0.0
        %290 = vmatpush1.msra.mxu0 0.0
        %291 = vmatprep.subr.mxu0 0.0
        %292 = vmatpush1.msra.mxu0 0.0
        %293 = vmatprep.subr.mxu0 0.0
        %294 = vmatpush1.msra.mxu0 0.0
        %295 = vmatprep.subr.mxu0 0.0
        %296 = vmatpush1.msra.mxu0 0.0
        %297 = vmatprep.subr.mxu0 0.0
        %298 = vmatpush1.msra.mxu0 0.0
        %299 = vmatprep.subr.mxu0 0.0
        %300 = vmatpush1.msra.mxu0 0.0
        %301 = vmatprep.subr.mxu0 0.0
        %302 = vmatpush1.msra.mxu0 0.0
        %303 = vmatprep.subr.mxu0 0.0
        %304 = vmatpush1.msra.mxu0 0.0
        %305 = vmatprep.subr.mxu0 0.0
        %306 = vmatpush1.msra.mxu0 0.0
        %307 = vmatprep.subr.mxu0 0.0
        %308 = vmatpush1.msra.mxu0 0.0
        %309 = vmatprep.subr.mxu0 0.0
        %310 = vmatpush1.msra.mxu0 0.0
        %311 = vmatprep.subr.mxu0 0.0
        %312 = vmatpush1.msra.mxu0 0.0
        %313 = vmatprep.subr.mxu0 0.0
        %314 = vmatpush1.msra.mxu0 0.0
        %315 = vmatprep.subr.mxu0 0.0
        %316 = vmatpush1.msra.mxu0 0.0
        %317 = vmatprep.subr.mxu0 0.0
        %318 = vmatpush1.msra.mxu0 0.0
        %319 = vmatprep.subr.mxu0 0.0
        %320 = vmatpush1.msra.mxu0 0.0
        %321 = vmatprep.subr.mxu0 0.0
        %322 = vmatpush1.msra.mxu0 0.0
        %323 = vmatprep.subr.mxu0 0.0
        %324 = vmatpush1.msra.mxu0 0.0
        %325 = vmatprep.subr.mxu0 0.0
        %326 = vmatpush1.msra.mxu0 0.0
        %327 = vmatprep.mubr.f32.mxu0 0.0
        %328 = vmatmul.mubr.f32.gmra.mrb[0].mxu0 %v261
        %v329 = vpop.f32.mrb[0].mxu0
        %v330 = vadd.f32 0.0, %v329
        %v331 = vpop.f32.mrb[0].mxu0
        %332 = vdwg.mxu0
        %v333 = vadd.f32 %v258, %v330
        %334 = vst [vmem:[%s242] sm:$0xff] %v333
        // Predicated region
        $region45: #{tpu_custom_call.1} parent=31 // pred_check
          %p335 = pneg %p246
        $region46: #{tpu_custom_call.1} parent=31 // pred_check_branch
          %337 = sbr.rel (%p335) target = $region48
        $region47: #{tpu_custom_call.1} parent=31 // pred_region
          %v338 = vld [vmem:[%s242] sm:$0xff]
          %v339 = vld [vmem:[%s245] sm:$0x1]
          %v341 = vlaneseq
          %v342 = vshrl.u32 %v341, 7
          %v343 = vsub.s32 0, %v342
          %v344 = vrot.slane %v339, %v343
          %v346 = vadd.f32 %v338, %v344
          %347 = vst [vmem:[%s242] sm:$0xff] %v346
        $region48: #{tpu_custom_call.1} parent=31 // pred_fallthru
          _
        %s348 = sand.u32 %s130, 1
        %s349 = scalar_lea.sflag [#allocation4], %s348
        %s350 = sand.u32 %s130, 1
        %s351 = smul.addr %s350, 8
        %s352 = scalar_lea.vmem [#allocation7], %s351
        // Predicated region
        $region49: #{tpu_custom_call.1} parent=31 // pred_check
          %p353 = pneg %p140
        $region50: #{tpu_custom_call.1} parent=31 // pred_check_branch
          %355 = sbr.rel (%p353) target = $region52
        $region51: #{tpu_custom_call.1} parent=31 // pred_region
          %s357 = ssub.s32 128, 128
          %358 = vsyncadd %s349, %s357
          %s359 = smul.addr %s27, 2
          %s360 = sadd.s32 %s26, %s359
          %s361 = smul.addr %s360, 128
          %s362 = scalar_lea.hbm %s3, %s361
          %s364 = sshll.u32 %s352, 4
          %s365 = int_to_ptr.vmem [resolvable:$true] %s364
          %367 = dma.vmem_to_hbm [thread:$0]  %s365, 128, %s362, %s349
        $region52: #{tpu_custom_call.1} parent=31 // pred_fallthru
          _
      $region32: #{tpu_custom_call.1} parent=5 // pred_fallthru
        _
      %p368 = scmp.le.s32.totalorder 2, %s16
      // Predicated region
      $region53: #{tpu_custom_call.1} parent=5 // pred_check
        %p369 = pneg %p368
      $region54: #{tpu_custom_call.1} parent=5 // pred_check_branch
        %371 = sbr.rel (%p369) target = $region56
      $region55: #{tpu_custom_call.1} parent=5 // pred_region
        %s372 = ssub.s32 %s16, 2
        // Predicated region
        $region57: #{tpu_custom_call.1} parent=55 // pred_check
          %p373 = pneg %p146
        $region58: #{tpu_custom_call.1} parent=55 // pred_check_branch
          %375 = sbr.rel (%p373) target = $region60
        $region59: #{tpu_custom_call.1} parent=55 // pred_region
          %s376 = sand.u32 %s131, 1
          %s377 = scalar_lea.sflag [#allocation4], %s376
          %s378 = sand.u32 %s131, 1
          %s379 = smul.addr %s378, 8
          %s380 = scalar_lea.vmem [#allocation7], %s379
          %381 = dma.done %s377, 128
        $region60: #{tpu_custom_call.1} parent=55 // pred_fallthru
          _
      $region56: #{tpu_custom_call.1} parent=5 // pred_fallthru
        _
    $region6: #{tpu_custom_call.1} parent=1 // loop_footer
      %s20 = sadd.s32 1, %s16
    $region7: #{tpu_custom_call.1} parent=1 // loop_footer_branch
      %15 = sbr.rel target = $region3
    $region8: #{tpu_custom_call.1} parent=1 // loop_exit
      _
    %382 = vsyncpa [#allocation3], 1
    %s383 = scalar_lea.sflag [#allocation3], 1
    %384 = vsyncpa %s383, 1
    %385 = vsyncpa [#allocation6], 1
    %s386 = scalar_lea.sflag [#allocation6], 1
    %387 = vsyncpa %s386, 1
    %388 = vsyncpa [#allocation4], 1
    %s389 = scalar_lea.sflag [#allocation4], 1
    %390 = vsyncpa %s389, 1

</llo_original>
